<compile_context>
chip_gen: v7x
topology: tpu7x:2x2x1
jax: 0.10.0
libtpu: 0.0.40
codegen_flags: <defaults>
</compile_context>

<pallas_src>
import math

import jax
import jax.numpy as jnp
from jax.experimental import pallas as pl
from jax.experimental.pallas import tpu as pltpu


# ---------------------------------------------------------------------------
# helpers
# ---------------------------------------------------------------------------
def _pick_block(n, cap):
    """Largest power-of-two tile <= cap that divides n, else n (full dim)."""
    blk = cap
    while blk >= 8:
        if n % blk == 0:
            return blk
        blk //= 2
    return n


def _vmem_params(semantics, tile_bytes):
    """Generation-aware VMEM limit: ~2x working set + slack, capped at 85% of
    physical VMEM (64 MiB on v7x, 128 MiB on v5e/v6e)."""
    try:
        cap = int(pltpu.get_tpu_info().vmem_capacity_bytes)
    except Exception:  # pragma: no cover - fallback if query unsupported
        cap = 64 << 20
    hi = int(cap * 0.85)
    want = 2 * int(tile_bytes) + (8 << 20)
    limit = max(min(want, hi), min(32 << 20, hi))
    return pltpu.CompilerParams(dimension_semantics=tuple(semantics),
                                vmem_limit_bytes=limit)


def _head_block(h):
    # Second-minor block dim must be a multiple of 8 or the full dim.
    return 8 if (h % 8 == 0) else h


# ---------------------------------------------------------------------------
# Kernel 1: tiled linear  y = x @ W_t + b
# W_t: (d_in, d_out) bf16 (pre-transposed, streamed in (d_in, tn) slabs);
# b:   (1, d_out) f32; activations cast to bf16 in-kernel, f32 accumulation.
# ---------------------------------------------------------------------------
def _linear_kernel(x_ref, w_ref, b_ref, o_ref):
    x = x_ref[...].astype(w_ref.dtype)            # bf16 cast on the VPU
    acc = jnp.dot(x, w_ref[...], preferred_element_type=jnp.float32)
    o_ref[...] = (acc + b_ref[...]).astype(o_ref.dtype)


def linear(x2d, w_t, b_row, out_dtype=None, tm_cap=256, tn_cap=512):
    """x2d: (N, D_in); w_t: (D_in, D_out); b_row: (1, D_out)."""
    n, d_in = x2d.shape
    d_out = w_t.shape[1]
    out_dtype = out_dtype if out_dtype is not None else x2d.dtype
    tm = _pick_block(n, tm_cap)
    tn = d_out if d_out <= tn_cap else _pick_block(d_out, tn_cap)
    tile_bytes = (tm * d_in * x2d.dtype.itemsize
                  + d_in * tn * w_t.dtype.itemsize
                  + tn * 4
                  + tm * tn * jnp.dtype(out_dtype).itemsize)
    return pl.pallas_call(
        _linear_kernel,
        out_shape=jax.ShapeDtypeStruct((n, d_out), out_dtype),
        grid=(n // tm, d_out // tn),
        in_specs=[
            pl.BlockSpec((tm, d_in), lambda i, j: (i, 0)),
            pl.BlockSpec((d_in, tn), lambda i, j: (0, j)),   # weight slab, not full-resident
            pl.BlockSpec((1, tn), lambda i, j: (0, j)),
        ],
        out_specs=pl.BlockSpec((tm, tn), lambda i, j: (i, j)),
        compiler_params=_vmem_params(("parallel", "parallel"), tile_bytes),
    )(x2d, w_t, b_row)


# ---------------------------------------------------------------------------
# Kernel 2: flash-style attention (no attention-weights writeback).
# Arrays stay in (B, S, H, depth) layout; grid = (B, H/hb, q_blocks, kv_blocks).
# Causal mask generated in-kernel (iota); fully-masked causal kv blocks skip
# compute (pl.when) AND DMA (clamped K/V index maps).
# ---------------------------------------------------------------------------
def _make_flash_kernel(tq, tk, nd, ns, causal):
    neg = -10000.0  # exactly the reference's additive mask scale

    def kernel(q_ref, k_ref, v_ref, o_ref, m_sc, l_sc, acc_sc):
        qi = pl.program_id(2)
        ki = pl.program_id(3)

        @pl.when(ki == 0)
        def _init():
            m_sc[...] = jnp.full_like(m_sc, -jnp.inf)
            l_sc[...] = jnp.zeros_like(l_sc)
            acc_sc[...] = jnp.zeros_like(acc_sc)

        def step():
            q = q_ref[0]                          # (tq, hb, depth)  bf16
            k = k_ref[0]                          # (tk, hb, depth)  bf16
            v = v_ref[0]                          # (tk, hb, depth)  bf16
            # Batched over heads, contracting depth (no in-kernel transpose).
            s = jnp.einsum('qhd,khd->hqk', q, k,
                           preferred_element_type=jnp.float32)      # (hb, tq, tk)
            if causal:
                row = (jax.lax.broadcasted_iota(jnp.int32, (tq, tk), 0)
                       + qi * tq + (ns - nd))
                col = jax.lax.broadcasted_iota(jnp.int32, (tq, tk), 1) + ki * tk
                s = s + jnp.where(col > row, neg, 0.0)[None, :, :]
            m_prev = m_sc[...]
            m_new = jnp.maximum(m_prev, jnp.max(s, axis=-1, keepdims=True))
            alpha = jnp.exp(m_prev - m_new)
            p = jnp.exp(s - m_new)
            l_sc[...] = alpha * l_sc[...] + jnp.sum(p, axis=-1, keepdims=True)
            acc_sc[...] = alpha * acc_sc[...] + jnp.einsum(
                'hqk,khd->hqd', p.astype(v.dtype), v,
                preferred_element_type=jnp.float32)
            m_sc[...] = m_new

        if causal:
            last = ((ns - nd) + (qi + 1) * tq - 1) // tk   # last needed kv block
            pl.when(ki <= last)(step)
        else:
            step()

        @pl.when(ki == pl.num_programs(3) - 1)
        def _finalize():
            out = acc_sc[...] * pl.reciprocal(l_sc[...], approx=True)  # (hb, tq, depth)
            # One small transpose per output block -> lane-dense (tq, hb, depth) store.
            o_ref[0] = jnp.transpose(out, (1, 0, 2)).astype(o_ref.dtype)

    return kernel


def _flash_attention(q4, k4, v4, *, nd, ns, causal, out_dtype,
                     tq_cap=256, tk_cap=512):
    """q4: (B, Sq, H, depth); k4/v4: (B, Sk, H, depth)."""
    b, sq, h, depth = q4.shape
    sk = k4.shape[1]
    hb = _head_block(h)
    tq = _pick_block(sq, tq_cap)
    tk = _pick_block(sk, tk_cap)
    nq, nk = sq // tq, sk // tk

    def q_map(bi, hi, qi, ki):
        return (bi, qi, hi, 0)

    def o_map(bi, hi, qi, ki):
        return (bi, qi, hi, 0)

    if causal:
        def kv_map(bi, hi, qi, ki):
            # Clamp: fully-masked kv steps keep the previous block index, so
            # Pallas elides their K/V DMA entirely.
            last = ((ns - nd) + (qi + 1) * tq - 1) // tk
            return (bi, jnp.minimum(ki, last), hi, 0)
    else:
        def kv_map(bi, hi, qi, ki):
            return (bi, ki, hi, 0)

    kernel = _make_flash_kernel(tq, tk, nd, ns, causal)
    e_in = q4.dtype.itemsize
    tile_bytes = (2 * (tq + 2 * tk) * hb * depth * e_in            # q,k,v double-buffered
                  + 2 * tq * hb * depth * jnp.dtype(out_dtype).itemsize
                  + hb * tq * (depth + 2) * 4                      # scratch m/l/acc
                  + 3 * hb * tq * tk * 4)                          # s / p / mask live values
    return pl.pallas_call(
        kernel,
        out_shape=jax.ShapeDtypeStruct((b, sq, h, depth), out_dtype),
        grid=(b, h // hb, nq, nk),
        in_specs=[
            pl.BlockSpec((1, tq, hb, depth), q_map),
            # TODO(synk): if kv-axis DMA is still exposed, add pipeline_mode=pl.Buffered(3).
            pl.BlockSpec((1, tk, hb, depth), kv_map),
            pl.BlockSpec((1, tk, hb, depth), kv_map),
        ],
        out_specs=pl.BlockSpec((1, tq, hb, depth), o_map),
        scratch_shapes=[
            pltpu.VMEM((hb, tq, 1), jnp.float32),        # running max
            pltpu.VMEM((hb, tq, 1), jnp.float32),        # running denom
            pltpu.VMEM((hb, tq, depth), jnp.float32),    # running numerator
        ],
        compiler_params=_vmem_params(
            ("parallel", "parallel", "parallel", "arbitrary"), tile_bytes),
    )(q4, k4, v4)


# ---------------------------------------------------------------------------
# Kernel 3: attention that also materializes the (Sq, Sk) weights
# (only for output_attentions=True). grid = (B, H/hb, q_blocks).
# ---------------------------------------------------------------------------
def _make_weights_kernel(tq, sk, nd, ns, causal):
    def kernel(q_ref, k_ref, v_ref, o_ref, attn_ref):
        qi = pl.program_id(2)
        q = q_ref[0]                               # (tq, hb, depth)
        k = k_ref[0]                               # (sk, hb, depth)
        v = v_ref[0]                               # (sk, hb, depth)
        s = jnp.einsum('qhd,khd->hqk', q, k,
                       preferred_element_type=jnp.float32)          # (hb, tq, sk)
        if causal:
            row = (jax.lax.broadcasted_iota(jnp.int32, (tq, sk), 0)
                   + qi * tq + (ns - nd))
            col = jax.lax.broadcasted_iota(jnp.int32, (tq, sk), 1)
            s = s + jnp.where(col > row, -10000.0, 0.0)[None, :, :]
        m = jnp.max(s, axis=-1, keepdims=True)
        e = jnp.exp(s - m)
        p = e / jnp.sum(e, axis=-1, keepdims=True)
        attn_ref[0] = p.astype(attn_ref.dtype)     # (hb, tq, sk) matches block layout
        ctx = jnp.einsum('hqk,khd->hqd', p.astype(v.dtype), v,
                         preferred_element_type=jnp.float32)        # (hb, tq, depth)
        o_ref[0] = jnp.transpose(ctx, (1, 0, 2)).astype(o_ref.dtype)

    return kernel


def _attention_with_weights(q4, k4, v4, *, nd, ns, causal, out_dtype, tq_cap=256):
    # TODO(synk): K/V are held resident over the full key length per q block;
    # for very long sequences on v7x this path should additionally tile Sk.
    b, sq, h, depth = q4.shape
    sk = k4.shape[1]
    hb = _head_block(h)
    tq = _pick_block(sq, tq_cap)
    nq = sq // tq
    kernel = _make_weights_kernel(tq, sk, nd, ns, causal)
    e_in = q4.dtype.itemsize
    tile_bytes = (2 * (tq + 2 * sk) * hb * depth * e_in
                  + 2 * tq * hb * depth * jnp.dtype(out_dtype).itemsize
                  + 4 * hb * tq * sk * 4)
    return pl.pallas_call(
        kernel,
        out_shape=(jax.ShapeDtypeStruct((b, sq, h, depth), out_dtype),
                   jax.ShapeDtypeStruct((b, h, sq, sk), jnp.float32)),
        grid=(b, h // hb, nq),
        in_specs=[
            pl.BlockSpec((1, tq, hb, depth), lambda bi, hi, qi: (bi, qi, hi, 0)),
            pl.BlockSpec((1, sk, hb, depth), lambda bi, hi, qi: (bi, 0, hi, 0)),
            pl.BlockSpec((1, sk, hb, depth), lambda bi, hi, qi: (bi, 0, hi, 0)),
        ],
        out_specs=(
            pl.BlockSpec((1, tq, hb, depth), lambda bi, hi, qi: (bi, qi, hi, 0)),
            pl.BlockSpec((1, hb, tq, sk), lambda bi, hi, qi: (bi, hi, qi, 0)),
        ),
        compiler_params=_vmem_params(
            ("parallel", "parallel", "parallel"), tile_bytes),
    )(q4, k4, v4)


# ---------------------------------------------------------------------------
# MultiHeadAttention module (forward only)
# ---------------------------------------------------------------------------
class MultiHeadAttention:
    def __init__(self, d_model_size, num_heads, key, compute_dtype=jnp.bfloat16):
        assert d_model_size % num_heads == 0
        self.num_heads = num_heads
        self.d_model_size = d_model_size
        self.depth = d_model_size // num_heads
        self.compute_dtype = compute_dtype
        keys = jax.random.split(key, 8)
        scale = 1.0 / math.sqrt(d_model_size)
        # nn.Linear weight shape: (out_features, in_features) — fp32 masters.
        self.Wq_w = jax.random.uniform(keys[0], (d_model_size, d_model_size),
                                       jnp.float32, -scale, scale)
        self.Wq_b = jax.random.uniform(keys[1], (d_model_size,), jnp.float32, -scale, scale)
        self.Wk_w = jax.random.uniform(keys[2], (d_model_size, d_model_size),
                                       jnp.float32, -scale, scale)
        self.Wk_b = jax.random.uniform(keys[3], (d_model_size,), jnp.float32, -scale, scale)
        self.Wv_w = jax.random.uniform(keys[4], (d_model_size, d_model_size),
                                       jnp.float32, -scale, scale)
        self.Wv_b = jax.random.uniform(keys[5], (d_model_size,), jnp.float32, -scale, scale)
        self.dense_w = jax.random.uniform(keys[6], (d_model_size, d_model_size),
                                          jnp.float32, -scale, scale)
        self.dense_b = jax.random.uniform(keys[7], (d_model_size,), jnp.float32, -scale, scale)

        # Cached transposed weights in the MXU-native compute dtype (bf16);
        # biases stay f32 (added to the f32 accumulator).  1/sqrt(depth) is
        # baked into the Q projection (identical pre-softmax logits).
        inv_sqrt_d = 1.0 / math.sqrt(self.depth)
        cdt = compute_dtype
        self.wq_t = (self.Wq_w.T * inv_sqrt_d).astype(cdt)
        self.wq_br = (self.Wq_b * inv_sqrt_d).reshape(1, -1)
        self.wk_t = self.Wk_w.T.astype(cdt)
        self.wk_br = self.Wk_b.reshape(1, -1)
        self.wv_t = self.Wv_w.T.astype(cdt)
        self.wv_br = self.Wv_b.reshape(1, -1)
        self.dense_t = self.dense_w.T.astype(cdt)
        self.dense_br = self.dense_b.reshape(1, -1)
        # Fused QKV weights for the self-attention fast path (q is k is v).
        self.wqkv_t = jnp.concatenate([self.wq_t, self.wk_t, self.wv_t], axis=1)
        self.wqkv_br = jnp.concatenate([self.wq_br, self.wk_br, self.wv_br], axis=1)

    def forward(self, v, k, q, mask, layer_past=None, attention_mask=None,
                head_mask=None, use_cache=False, output_attentions=False):
        # TODO(synk): attention_mask / head_mask are not folded into the kernels
        # (matches the reference with attention_mask=None, head_mask=None).
        batch_size, seq_q, _ = q.shape
        d, h, depth = self.d_model_size, self.num_heads, self.depth
        cdt = self.compute_dtype

        if (q is k) and (k is v):
            # Fused QKV projection: one pallas_call, activations read once.
            qkv = linear(q.reshape(-1, d), self.wqkv_t, self.wqkv_br, out_dtype=cdt)
            q_p, k_p, v_p = qkv[:, :d], qkv[:, d:2 * d], qkv[:, 2 * d:]
            seq_k = seq_q
        else:
            q_p = linear(q.reshape(-1, d), self.wq_t, self.wq_br, out_dtype=cdt)
            k_p = linear(k.reshape(-1, d), self.wk_t, self.wk_br, out_dtype=cdt)
            v_p = linear(v.reshape(-1, d), self.wv_t, self.wv_br, out_dtype=cdt)
            seq_k = k.shape[1]

        # Natural (B, S, H, depth) views — free reshapes, NO host transposes.
        q4 = q_p.reshape(batch_size, seq_q, h, depth)
        k4 = k_p.reshape(batch_size, seq_k, h, depth)
        v4 = v_p.reshape(batch_size, seq_k, h, depth)

        if layer_past is not None:
            past_key, past_value = layer_past[0], layer_past[1]   # (B, H, Sp, depth)
            k4 = jnp.concatenate(
                [jnp.transpose(past_key, (0, 2, 1, 3)).astype(cdt), k4], axis=1)
            v4 = jnp.concatenate(
                [jnp.transpose(past_value, (0, 2, 1, 3)).astype(cdt), v4], axis=1)

        if use_cache:
            present = jnp.stack((jnp.transpose(k4, (0, 2, 1, 3)),
                                 jnp.transpose(v4, (0, 2, 1, 3))))
        else:
            present = (None,)

        nd, ns = seq_q, k4.shape[1]
        causal = mask is not None
        # TODO(synk): `mask` is assumed to be the CTRL causal (triu) mask — it is
        # regenerated analytically in-kernel rather than DMA'd; arbitrary mask
        # arrays are not supported by this fast path.

        if output_attentions:
            ctx, attn = _attention_with_weights(q4, k4, v4, nd=nd, ns=ns,
                                                causal=causal, out_dtype=cdt)
        else:
            ctx = _flash_attention(q4, k4, v4, nd=nd, ns=ns,
                                   causal=causal, out_dtype=cdt)
            attn = None

        # ctx is (B, Sq, H, depth) -> (B*Sq, d) is a free reshape (lane-dense).
        out = linear(ctx.reshape(-1, d), self.dense_t, self.dense_br, out_dtype=q.dtype)
        out = out.reshape(batch_size, seq_q, d)

        outputs = (out, present)
        if output_attentions:
            outputs = outputs + (attn,)
        return outputs


# ---------------------------------------------------------------------------
# Pure-JAX fp32 reference (mirrors the PyTorch module exactly)
# ---------------------------------------------------------------------------
def reference_forward(mha, v, k, q, mask):
    def lin(x, w, b):
        return x @ w.T + b
    b_ = q.shape[0]
    qp = lin(q, mha.Wq_w, mha.Wq_b)
    kp = lin(k, mha.Wk_w, mha.Wk_b)
    vp = lin(v, mha.Wv_w, mha.Wv_b)

    def split(x):
        return jnp.transpose(x.reshape(b_, -1, mha.num_heads, mha.depth), (0, 2, 1, 3))

    qp, kp, vp = split(qp), split(kp), split(vp)
    scores = jnp.einsum("bhqd,bhkd->bhqk", qp, kp) / math.sqrt(mha.depth)
    nd, ns = scores.shape[-2], scores.shape[-1]
    scores = scores + mask[ns - nd:ns, :ns][None, None] * (-10000.0)
    w = jax.nn.softmax(scores, axis=-1)
    out = jnp.einsum("bhqk,bhkd->bhqd", w, vp)
    out = jnp.transpose(out, (0, 2, 1, 3)).reshape(b_, -1, mha.d_model_size)
    return lin(out, mha.dense_w, mha.dense_b), w


if __name__ == "__main__":
    key = jax.random.PRNGKey(0)
    k_param, k_q, k_k, k_v, k_x = jax.random.split(key, 5)

    batch, seq, d_model, num_heads = 2, 8, 32, 4
    mha = MultiHeadAttention(d_model, num_heads, k_param)

    q_in = jax.random.normal(k_q, (batch, seq, d_model), jnp.float32)
    k_in = jax.random.normal(k_k, (batch, seq, d_model), jnp.float32)
    v_in = jax.random.normal(k_v, (batch, seq, d_model), jnp.float32)
    x_in = jax.random.normal(k_x, (batch, seq, d_model), jnp.float32)

    # CTRL causal mask: 1.0 strictly above diagonal, 0.0 elsewhere.
    causal_mask = jnp.triu(jnp.ones((seq, seq), jnp.float32), k=1)

    # Tolerances: kernels run bf16 weights/activations (f32 accumulate) plus
    # approx softmax reciprocal; reference is pure fp32.
    ATOL, RTOL = 5e-2, 5e-2

    # Path 1: distinct q/k/v + attention-weights kernel (output_attentions=True).
    out1, present1, attn1 = mha.forward(v_in, k_in, q_in, causal_mask,
                                        output_attentions=True)
    out1 = jax.block_until_ready(out1)
    attn1 = jax.block_until_ready(attn1)
    ref_out1, ref_attn1 = reference_forward(mha, v_in, k_in, q_in, causal_mask)
    assert out1.shape == (batch, seq, d_model)
    assert attn1.shape == (batch, num_heads, seq, seq)
    assert jnp.allclose(out1, ref_out1, atol=ATOL, rtol=RTOL), "output mismatch (path 1)"
    assert jnp.allclose(attn1, ref_attn1, atol=ATOL, rtol=RTOL), "attn mismatch (path 1)"

    # Path 2: self-attention -> fused QKV projection + flash kernel
    # (no (S, S) weights ever materialized, causal blocks skip compute + DMA).
    out2, present2 = mha.forward(x_in, x_in, x_in, causal_mask)
    out2 = jax.block_until_ready(out2)
    ref_out2, _ = reference_forward(mha, x_in, x_in, x_in, causal_mask)
    assert out2.shape == (batch, seq, d_model)
    assert jnp.allclose(out2, ref_out2, atol=ATOL, rtol=RTOL), "output mismatch (path 2)"

    print("KERNEL_OK")
</pallas_src>

<mosaic_0001>
module attributes {stable_mosaic.version = 11 : i64} {
  func.func @_linear_kernel(%arg0: i32, %arg1: i32, %arg2: memref<16x32xf32, #tpu.memory_space<vmem>>, %arg3: memref<32x32xbf16, #tpu.memory_space<vmem>>, %arg4: memref<1x32xf32, #tpu.memory_space<vmem>>, %arg5: memref<16x32xbf16, #tpu.memory_space<vmem>>) attributes {dimension_semantics = [#tpu.dimension_semantics<parallel>, #tpu.dimension_semantics<parallel>], iteration_bounds = array<i64: 1, 1>, scalar_prefetch = 0 : i64, scratch_operands = 0 : i64, tpu.core_type = #tpu.core_type<tc>, window_params = [{transform_indices = @transform_0, window_bounds = array<i64: 16, 32>}, {transform_indices = @transform_1, window_bounds = array<i64: 32, 32>}, {transform_indices = @transform_2, window_bounds = array<i64: 1, 32>}, {transform_indices = @transform_3, window_bounds = array<i64: 16, 32>}]} {
    %c0 = arith.constant 0 : index
    %c0_0 = arith.constant 0 : index
    %0 = vector.load %arg2[%c0, %c0_0] : memref<16x32xf32, #tpu.memory_space<vmem>>, vector<16x32xf32>
    %1 = arith.truncf %0 : vector<16x32xf32> to vector<16x32xbf16>
    %c0_1 = arith.constant 0 : index
    %c0_2 = arith.constant 0 : index
    %2 = vector.load %arg3[%c0_1, %c0_2] : memref<32x32xbf16, #tpu.memory_space<vmem>>, vector<32x32xbf16>
    %cst = arith.constant dense<0.000000e+00> : vector<16x32xf32>
    %3 = tpu.matmul %1, %2, %cst {dimension_numbers = #tpu.dot_dimension_numbers<[1], [0], [0], [1], [0, 0, 1, 1], [], []>} : vector<16x32xbf16>, vector<32x32xbf16>, vector<16x32xf32> -> vector<16x32xf32>
    %c0_3 = arith.constant 0 : index
    %c0_4 = arith.constant 0 : index
    %4 = vector.load %arg4[%c0_3, %c0_4] : memref<1x32xf32, #tpu.memory_space<vmem>>, vector<1x32xf32>
    %5 = vector.broadcast %4 : vector<1x32xf32> to vector<16x32xf32>
    %6 = arith.addf %3, %5 : vector<16x32xf32>
    %7 = arith.truncf %6 : vector<16x32xf32> to vector<16x32xbf16>
    %c0_5 = arith.constant 0 : index
    %c0_6 = arith.constant 0 : index
    %8 = vector.load %arg5[%c0_5, %c0_6] : memref<16x32xbf16, #tpu.memory_space<vmem>>, vector<16x32xbf16>
    tpu.vector_store %arg5[%c0_5, %c0_6], %7 {strides = array<i32>} : memref<16x32xbf16, #tpu.memory_space<vmem>>, vector<16x32xbf16>,
    return
  }
  func.func @transform_0(%arg0: i32, %arg1: i32) -> (i32, i32) {
    %c0_i32 = arith.constant 0 : i32
    %c0_i32_0 = arith.constant 0 : i32
    return %arg0, %c0_i32 : i32, i32
  }
  func.func @transform_1(%arg0: i32, %arg1: i32) -> (i32, i32) {
    %c0_i32 = arith.constant 0 : i32
    %c0_i32_0 = arith.constant 0 : i32
    return %c0_i32, %arg1 : i32, i32
  }
  func.func @transform_2(%arg0: i32, %arg1: i32) -> (i32, i32) {
    %c0_i32 = arith.constant 0 : i32
    %c0_i32_0 = arith.constant 0 : i32
    return %c0_i32, %arg1 : i32, i32
  }
  func.func @transform_3(%arg0: i32, %arg1: i32) -> (i32, i32) {
    %c0_i32 = arith.constant 0 : i32
    return %arg0, %arg1 : i32, i32
  }
}

</mosaic_0001>

<llo_original>
// kernel: tpu_custom_call.1
$region0: #{tpu_custom_call.1}
  #allocation0 [shape = 'u32[]', space=smem, size = 0x4, offset = 0x4, fixed_abs, tag = 'smem constant byte address 0x4 - core index']
  #allocation1 [shape = 'u32[144,128]{1,0:T(1,128)}', space=vmem, size = 0x12000, scoped, tag = 'internal scratch']
  %s0 = inlined_call_operand.hbm [shape: f32[16,32], index: 0, kind: input, shape index: {}]
  %s1 = inlined_call_operand.hbm [shape: bf16[32,32], index: 1, kind: input, shape index: {}]
  %s2 = inlined_call_operand.vmem [shape: f32[1,32], index: 2, kind: input, shape index: {}]
  %s3 = inlined_call_operand.hbm [shape: bf16[16,32], index: 3, kind: output, shape index: {}]
  %s4 = sld [smem:[#allocation0]]
  $region30: #{tpu_custom_call.1} parent=0
    _
  %s6 = ssub.s32 1, %s4
  %s7 = scalar_select 0, %s6, %s4
  $region1: #{tpu_custom_call.1} parent=0
    #allocation2 [shape = 'u8[8192]{0}', space=vmem, size = 0x2000, scoped, tag = 'input window, operand 0, single buffered']
    #allocation3 [shape = 's32[1]{0}', space=sflag, size = 0x4, scoped, tag = 'scoped memory for tpu_custom_call.1']
    #allocation4 [shape = 's32[1]{0}', space=sflag, size = 0x4, scoped, tag = 'scoped memory for tpu_custom_call.1']
    #allocation5 [shape = 'u8[8192]{0}', space=vmem, size = 0x2000, scoped, tag = 'input window, operand 1, single buffered']
    #allocation6 [shape = 's32[1]{0}', space=sflag, size = 0x4, scoped, tag = 'scoped memory for tpu_custom_call.1']
    #allocation7 [shape = 'u8[4096]{0}', space=vmem, size = 0x1000, scoped, tag = 'output window, operand 0, single buffered']
    %8 = vsyncpa [#allocation3], 0
    %9 = vsyncpa [#allocation6], 0
    %10 = vsyncpa [#allocation4], 0
    // Predicated region
    $region2: #{tpu_custom_call.1} parent=1 // pred_check
      _
    $region3: #{tpu_custom_call.1} parent=1 // pred_check_branch
      %12 = sbr.rel (0) target = $region5
    $region4: #{tpu_custom_call.1} parent=1 // pred_region
      %s14 = ssub.s32 256, 256
      %15 = vsyncadd [#allocation3], %s14
      %s16 = sshll.u32 [#allocation2], 4
      %s17 = int_to_ptr.vmem [resolvable:$true] %s16
      %22 = dma.hbm_to_vmem [thread:$0]  %s0, 256, %s17, [#allocation3], 128, 128, 8
    $region5: #{tpu_custom_call.1} parent=1 // pred_fallthru
      _
    // Predicated region
    $region6: #{tpu_custom_call.1} parent=1 // pred_check
      _
    $region7: #{tpu_custom_call.1} parent=1 // pred_check_branch
      %24 = sbr.rel (0) target = $region9
    $region8: #{tpu_custom_call.1} parent=1 // pred_region
      %s26 = ssub.s32 256, 256
      %27 = vsyncadd [#allocation6], %s26
      %s28 = sshll.u32 [#allocation5], 4
      %s29 = int_to_ptr.vmem [resolvable:$true] %s28
      %34 = dma.hbm_to_vmem [thread:$0]  %s1, 256, %s29, [#allocation6], 64, 64, 4
    $region9: #{tpu_custom_call.1} parent=1 // pred_fallthru
      _
    // Predicated region
    $region10: #{tpu_custom_call.1} parent=1 // pred_check
      _
    $region11: #{tpu_custom_call.1} parent=1 // pred_check_branch
      %36 = sbr.rel (0) target = $region13
    $region12: #{tpu_custom_call.1} parent=1 // pred_region
      _
    $region13: #{tpu_custom_call.1} parent=1 // pred_fallthru
      _
    // Predicated region
    $region14: #{tpu_custom_call.1} parent=1 // pred_check
      _
    $region15: #{tpu_custom_call.1} parent=1 // pred_check_branch
      %38 = sbr.rel (0) target = $region17
    $region16: #{tpu_custom_call.1} parent=1 // pred_region
      %39 = dma.done [#allocation3], 256
    $region17: #{tpu_custom_call.1} parent=1 // pred_fallthru
      _
    // Predicated region
    $region18: #{tpu_custom_call.1} parent=1 // pred_check
      _
    $region19: #{tpu_custom_call.1} parent=1 // pred_check_branch
      %41 = sbr.rel (0) target = $region21
    $region20: #{tpu_custom_call.1} parent=1 // pred_region
      %42 = dma.done [#allocation6], 256
    $region21: #{tpu_custom_call.1} parent=1 // pred_fallthru
      _
    %v44 = vld [vmem:[#allocation2] sm:$0xff]
    %v45 = vld [vmem:[#allocation2 + $0x8] sm:$0xff]
    %v46 = vpack.c.bf16 %v45, %v44
    %v47 = vld [vmem:[#allocation5] sm:$0xf]
    %v48 = vld [vmem:[#allocation5 + $0x4] sm:$0xf]
    %v49 = vld [vmem:[#allocation5 + $0x8] sm:$0xf]
    %v50 = vld [vmem:[#allocation5 + $0xc] sm:$0xf]
    %v51 = vld [vmem:[%s2] sm:$0x1]
    %v53 = vlaneseq
    %v54 = vshrl.u32 %v53, 7
    %v55 = vsub.s32 0, %v54
    %v56 = vrot.slane %v51, %v55
    %v62 = vunpack.c.l.b16 %v47
    %v63 = vunpack.c.l.b16 %v48
    %v64 = vunpack.c.l.b16 %v49
    %v65 = vunpack.c.l.b16 %v50
    %v66 = vpack.c.b16 %v63, %v62
    %v67 = vpack.c.b16 %v65, %v64
    %vm70 = vcmask 261120
    %v72 = vsel %vm70, %v46, 0
    %74 = vmatprep.subr.bf16.mxu0 0
    %75 = vmatpush1.bf16.msra.mxu0 %v66
    %76 = vmatprep.subr.bf16.mxu0 0
    %77 = vmatpush1.bf16.msra.mxu0 %v67
    %78 = vmatprep.subr.bf16.mxu0 0
    %79 = vmatpush1.bf16.msra.mxu0 0
    %80 = vmatprep.subr.bf16.mxu0 0
    %81 = vmatpush1.bf16.msra.mxu0 0
    %82 = vmatprep.subr.bf16.mxu0 0
    %83 = vmatpush1.bf16.msra.mxu0 0
    %84 = vmatprep.subr.bf16.mxu0 0
    %85 = vmatpush1.bf16.msra.mxu0 0
    %86 = vmatprep.subr.bf16.mxu0 0
    %87 = vmatpush1.bf16.msra.mxu0 0
    %88 = vmatprep.subr.bf16.mxu0 0
    %89 = vmatpush1.bf16.msra.mxu0 0
    %90 = vmatprep.subr.bf16.mxu0 0
    %91 = vmatpush1.bf16.msra.mxu0 0
    %92 = vmatprep.subr.bf16.mxu0 0
    %93 = vmatpush1.bf16.msra.mxu0 0
    %94 = vmatprep.subr.bf16.mxu0 0
    %95 = vmatpush1.bf16.msra.mxu0 0
    %96 = vmatprep.subr.bf16.mxu0 0
    %97 = vmatpush1.bf16.msra.mxu0 0
    %98 = vmatprep.subr.bf16.mxu0 0
    %99 = vmatpush1.bf16.msra.mxu0 0
    %100 = vmatprep.subr.bf16.mxu0 0
    %101 = vmatpush1.bf16.msra.mxu0 0
    %102 = vmatprep.subr.bf16.mxu0 0
    %103 = vmatpush1.bf16.msra.mxu0 0
    %104 = vmatprep.subr.bf16.mxu0 0
    %105 = vmatpush1.bf16.msra.mxu0 0
    %106 = vmatprep.mubr.bf16.mxu0 0
    %107 = vmatmul.mubr.bf16.gmra.mrb[0].mxu0 %v72
    %v108 = vpop.f32.mrb[0].mxu0
    %v109 = vadd.f32 %v56, %v108
    %v110 = vpop.f32.mrb[0].mxu0
    %v111 = vpop.f32.mrb[0].mxu0
    %v112 = vadd.f32 %v56, %v111
    %v113 = vpop.f32.mrb[0].mxu0
    %114 = vdwg.mxu0
    %v115 = vpack.c.bf16 %v112, %v109
    %v117 = vunpack.c.l.b16 %v115
    %v118 = vunpack.c.h.b16 %v115
    %v119 = vpack.c.b16 %v117, %v117
    %v120 = vpack.c.b16 %v118, %v118
    %vm123 = vcmask 257024
    %124 = vst.msk [vmem:[#allocation7] sm:$0xf] %vm123, %v119
    %125 = vst.msk [vmem:[#allocation7 + $0x4] sm:$0xf] %vm123, %v120
    // Predicated region
    $region22: #{tpu_custom_call.1} parent=1 // pred_check
      _
    $region23: #{tpu_custom_call.1} parent=1 // pred_check_branch
      %127 = sbr.rel (0) target = $region25
    $region24: #{tpu_custom_call.1} parent=1 // pred_region
      %s129 = ssub.s32 128, 128
      %130 = vsyncadd [#allocation4], %s129
      %s131 = sshll.u32 [#allocation7], 4
      %s132 = int_to_ptr.vmem [resolvable:$true] %s131
      %137 = dma.vmem_to_hbm [thread:$0]  %s132, 128, %s3, [#allocation4], 64, 64, 4
    $region25: #{tpu_custom_call.1} parent=1 // pred_fallthru
      _
    // Predicated region
    $region26: #{tpu_custom_call.1} parent=1 // pred_check
      _
    $region27: #{tpu_custom_call.1} parent=1 // pred_check_branch
      %139 = sbr.rel (0) target = $region29
    $region28: #{tpu_custom_call.1} parent=1 // pred_region
      %140 = dma.done [#allocation4], 128
    $region29: #{tpu_custom_call.1} parent=1 // pred_fallthru
      _
    %141 = vsyncpa [#allocation3], 1
    %142 = vsyncpa [#allocation6], 1
    %143 = vsyncpa [#allocation4], 1

</llo_original>
